<compile_context>
chip_gen: v7x
topology: tpu7x:2x2x1
jax: 0.10.0
libtpu: 0.0.40
codegen_flags: <defaults>
</compile_context>

<pallas_src>
import math

import jax
import jax.numpy as jnp
from jax.experimental import pallas as pl
from jax.experimental.pallas import tpu as pltpu


def _gelu_tanh(x):
    # torch.nn.functional.gelu(x, approximate='tanh')
    c = math.sqrt(2.0 / math.pi)
    return 0.5 * x * (1.0 + jnp.tanh(c * (x + 0.044715 * x * x * x)))


def _round_up(x, m):
    return ((x + m - 1) // m) * m


def _pick_ts(s8, ts_cap):
    """Largest row-tile <= ts_cap (multiple of 8) that minimises padding."""
    if s8 <= ts_cap:
        return s8
    best_key, best_t = None, ts_cap
    lo = max(8, min(128, ts_cap))
    for t in range(ts_cap, lo - 1, -8):
        waste = _round_up(s8, t) - s8
        key = (waste, -t)
        if best_key is None or key < best_key:
            best_key, best_t = key, t
        if waste == 0:
            break
    return best_t


def mlp_kernel(x_ref, wfc_ref, bfc_ref, wproj_ref, bproj_ref, o_ref, acc_ref):
    k = pl.program_id(1)

    @pl.when(k == 0)
    def _():
        # Fold b_proj into the accumulator init (added exactly once per row tile).
        acc_ref[...] = jnp.broadcast_to(
            bproj_ref[...].astype(jnp.float32), acc_ref.shape)

    # c_fc chunk: [tS, H_p] @ [H_p, tI] + [1, tI]  (bf16 in, f32 accumulate).
    h = jnp.dot(x_ref[...], wfc_ref[...], preferred_element_type=jnp.float32)
    h = h + bfc_ref[...].astype(jnp.float32)
    # GELU kept in f32 (EUP tanh; no bf16 round-trips on the VPU path).
    h = _gelu_tanh(h)
    # c_proj partial: [tS, tI] @ [tI, H_p] accumulated into the f32 scratch.
    acc_ref[...] += jnp.dot(
        h.astype(wproj_ref.dtype), wproj_ref[...],
        preferred_element_type=jnp.float32)

    @pl.when(k == pl.num_programs(1) - 1)
    def _():
        o_ref[...] = acc_ref[...].astype(o_ref.dtype)


def mlp_forward(x, w_fc, b_fc, w_proj, b_proj, *,
                ts_max=512, ti_max=512, compute_dtype=jnp.bfloat16):
    S, H = x.shape
    I = w_fc.shape[1]
    assert w_fc.shape == (H, I)
    assert b_fc.shape == (I,)
    assert w_proj.shape == (I, H)
    assert b_proj.shape == (H,)

    out_dtype = x.dtype
    cdt = jnp.dtype(compute_dtype)
    csz = cdt.itemsize
    osz = jnp.dtype(out_dtype).itemsize

    H_p = _round_up(H, 128)            # lane-dense last dim everywhere
    I_p128 = _round_up(I, 128)
    S8 = _round_up(S, 8)

    # --- chip VMEM budget ----------------------------------------------------
    try:
        vmem_cap = int(pltpu.get_tpu_info().vmem_capacity_bytes)
    except Exception:
        vmem_cap = 64 << 20            # conservative fallback (v7x per-core size)
    budget = max(vmem_cap - (8 << 20), 16 << 20)

    def vmem_need(ts, ti, wbuf):
        n = 2 * ts * H_p * csz         # x tile (double-buffered, resident across k)
        n += wbuf * H_p * ti * csz     # W_fc column chunk
        n += wbuf * ti * H_p * csz     # W_proj row chunk
        n += 2 * (ti + H_p) * 4        # biases (f32)
        n += 2 * ts * H_p * osz        # output tile
        n += ts * H_p * 4              # f32 accumulator scratch
        n += 2 * ts * ti * 4           # f32 GELU intermediate + temporaries
        n += 2 << 20                   # Mosaic internal scratch
        return n

    # --- tile sizing (shrink tI first — floor 256 — then tS) -----------------
    tI_floor = min(256, I_p128)
    tI = max(min(ti_max, I_p128), tI_floor)
    tS_cap = min(ts_max, S8)
    while vmem_need(tS_cap, tI, 2) > budget and tI - 128 >= tI_floor:
        tI -= 128
    while vmem_need(tS_cap, tI, 2) > budget and tS_cap > 64:
        tS_cap = max(64, _round_up(tS_cap // 2, 8))
    tS = _pick_ts(S8, tS_cap)          # minimise row padding for awkward S

    S_p = _round_up(S, tS)
    I_p = _round_up(I, tI)
    grid = (S_p // tS, I_p // tI)

    # Triple-buffer weight tiles only when there is a real reduction loop and
    # plenty of VMEM slack (v5e/v6e with 128 MiB; skipped on v7x's 64 MiB).
    wbuf = 2
    if grid[1] >= 3 and vmem_cap >= (96 << 20) and vmem_need(tS, tI, 3) <= budget:
        wbuf = 3

    need = vmem_need(tS, tI, wbuf)
    vmem_limit = int(min(max(need + (4 << 20), 32 << 20), budget))

    # --- zero-pad + cast to the MXU dtype (padding contributes exactly 0) ----
    xp = jnp.pad(x, ((0, S_p - S), (0, H_p - H))).astype(cdt)
    wfcp = jnp.pad(w_fc, ((0, H_p - H), (0, I_p - I))).astype(cdt)
    bfcp = jnp.pad(b_fc, (0, I_p - I)).astype(jnp.float32).reshape(1, I_p)
    wprojp = jnp.pad(w_proj, ((0, I_p - I), (0, H_p - H))).astype(cdt)
    bprojp = jnp.pad(b_proj, (0, H_p - H)).astype(jnp.float32).reshape(1, H_p)

    cost = pl.CostEstimate(
        flops=int(4 * S_p * H_p * I_p),                 # two matmuls
        transcendentals=int(S_p * I_p),                 # tanh in GELU
        bytes_accessed=int(
            xp.size * csz                               # x read once (resident across k)
            + grid[0] * (wfcp.size + wprojp.size) * csz  # weights re-streamed per row tile
            + grid[0] * (bfcp.size + bprojp.size) * 4
            + S_p * H_p * osz),                          # output
    )

    if wbuf == 3:
        wfc_spec = pl.BlockSpec((H_p, tI), lambda s, k: (0, k),
                                pipeline_mode=pl.Buffered(3))
        wproj_spec = pl.BlockSpec((tI, H_p), lambda s, k: (k, 0),
                                  pipeline_mode=pl.Buffered(3))
    else:
        wfc_spec = pl.BlockSpec((H_p, tI), lambda s, k: (0, k))
        wproj_spec = pl.BlockSpec((tI, H_p), lambda s, k: (k, 0))

    # TODO(synk): for v7x decode shapes (tiny S, grid[0]==1) split the I
    # reduction across the two TensorCores with core_map instead of leaving
    # the second core idle.
    out_p = pl.pallas_call(
        mlp_kernel,
        out_shape=jax.ShapeDtypeStruct((S_p, H_p), out_dtype),
        grid_spec=pltpu.PrefetchScalarGridSpec(
            num_scalar_prefetch=0,
            grid=grid,
            in_specs=[
                pl.BlockSpec((tS, H_p), lambda s, k: (s, 0)),   # x rows (resident across k)
                wfc_spec,                                       # W_fc column chunk
                pl.BlockSpec((1, tI), lambda s, k: (0, k)),     # b_fc chunk
                wproj_spec,                                     # W_proj row chunk
                pl.BlockSpec((1, H_p), lambda s, k: (0, 0)),    # b_proj
            ],
            out_specs=pl.BlockSpec((tS, H_p), lambda s, k: (s, 0)),
            scratch_shapes=[pltpu.VMEM((tS, H_p), jnp.float32)],
        ),
        compiler_params=pltpu.CompilerParams(
            dimension_semantics=("parallel", "arbitrary"),
            vmem_limit_bytes=vmem_limit,
        ),
        cost_estimate=cost,
    )(xp, wfcp, bfcp, wprojp, bprojp)

    return out_p[:S, :H]


def mlp_reference(x, w_fc, b_fc, w_proj, b_proj):
    h = x @ w_fc + b_fc
    h = _gelu_tanh(h)
    return h @ w_proj + b_proj


if __name__ == "__main__":
    key = jax.random.PRNGKey(0)
    seq, hidden = 8, 32
    intermediate = 4 * hidden  # santacoder MLP expansion factor

    k1, k2, k3, k4, k5 = jax.random.split(key, 5)
    x = jax.random.normal(k1, (seq, hidden), dtype=jnp.float32)
    w_fc = jax.random.normal(k2, (hidden, intermediate), dtype=jnp.float32) * 0.02
    b_fc = jax.random.normal(k3, (intermediate,), dtype=jnp.float32) * 0.02
    w_proj = jax.random.normal(k4, (intermediate, hidden), dtype=jnp.float32) * 0.02
    b_proj = jax.random.normal(k5, (hidden,), dtype=jnp.float32) * 0.02

    out = mlp_forward(x, w_fc, b_fc, w_proj, b_proj)
    out = jax.block_until_ready(out)

    ref = mlp_reference(x, w_fc, b_fc, w_proj, b_proj)
    assert out.shape == (seq, hidden)
    # bf16 MXU inputs with f32 accumulation: compare at bf16-level tolerance.
    assert jnp.allclose(out, ref, atol=1e-2, rtol=1e-2), "mismatch vs reference"

    print("KERNEL_OK")
</pallas_src>

<mosaic_0001>
module attributes {stable_mosaic.version = 11 : i64} {
  func.func @mlp_kernel(%arg0: i32, %arg1: i32, %arg2: memref<8x128xbf16, #tpu.memory_space<vmem>>, %arg3: memref<128x128xbf16, #tpu.memory_space<vmem>>, %arg4: memref<1x128xf32, #tpu.memory_space<vmem>>, %arg5: memref<128x128xbf16, #tpu.memory_space<vmem>>, %arg6: memref<1x128xf32, #tpu.memory_space<vmem>>, %arg7: memref<8x128xf32, #tpu.memory_space<vmem>>, %arg8: memref<8x128xf32, #tpu.memory_space<vmem>>) attributes {dimension_semantics = [#tpu.dimension_semantics<parallel>, #tpu.dimension_semantics<arbitrary>], iteration_bounds = array<i64: 1, 1>, scalar_prefetch = 0 : i64, scratch_operands = 1 : i64, tpu.core_type = #tpu.core_type<tc>, window_params = [{transform_indices = @transform_0, window_bounds = array<i64: 8, 128>}, {transform_indices = @transform_1, window_bounds = array<i64: 128, 128>}, {transform_indices = @transform_2, window_bounds = array<i64: 1, 128>}, {transform_indices = @transform_3, window_bounds = array<i64: 128, 128>}, {pipeline_mode = #tpu.pipeline_mode<synchronous>, transform_indices = @transform_4, window_bounds = array<i64: 1, 128>}, {transform_indices = @transform_5, window_bounds = array<i64: 8, 128>}]} {
    %c0_i32 = arith.constant 0 : i32
    %0 = arith.cmpi eq, %arg1, %c0_i32 : i32
    %1 = arith.extui %0 : i1 to i32
    %c0_i32_0 = arith.constant 0 : i32
    %2 = arith.cmpi ne, %1, %c0_i32_0 : i32
    scf.if %2 {
      %c0_19 = arith.constant 0 : index
      %c0_20 = arith.constant 0 : index
      %31 = vector.load %arg6[%c0_19, %c0_20] : memref<1x128xf32, #tpu.memory_space<vmem>>, vector<1x128xf32>
      %32 = vector.shape_cast %31 : vector<1x128xf32> to vector<1x128xf32>
      %33 = vector.broadcast %32 : vector<1x128xf32> to vector<8x128xf32>
      %c0_21 = arith.constant 0 : index
      %c0_22 = arith.constant 0 : index
      %34 = vector.load %arg8[%c0_21, %c0_22] : memref<8x128xf32, #tpu.memory_space<vmem>>, vector<8x128xf32>
      tpu.vector_store %arg8[%c0_21, %c0_22], %33 {strides = array<i32>} : memref<8x128xf32, #tpu.memory_space<vmem>>, vector<8x128xf32>,
    } else {
    }
    %c0 = arith.constant 0 : index
    %c0_1 = arith.constant 0 : index
    %3 = vector.load %arg2[%c0, %c0_1] : memref<8x128xbf16, #tpu.memory_space<vmem>>, vector<8x128xbf16>
    %c0_2 = arith.constant 0 : index
    %c0_3 = arith.constant 0 : index
    %4 = vector.load %arg3[%c0_2, %c0_3] : memref<128x128xbf16, #tpu.memory_space<vmem>>, vector<128x128xbf16>
    %cst = arith.constant dense<0.000000e+00> : vector<8x128xf32>
    %5 = tpu.matmul %3, %4, %cst {dimension_numbers = #tpu.dot_dimension_numbers<[1], [0], [0], [1], [0, 0, 1, 1], [], []>} : vector<8x128xbf16>, vector<128x128xbf16>, vector<8x128xf32> -> vector<8x128xf32>
    %c0_4 = arith.constant 0 : index
    %c0_5 = arith.constant 0 : index
    %6 = vector.load %arg4[%c0_4, %c0_5] : memref<1x128xf32, #tpu.memory_space<vmem>>, vector<1x128xf32>
    %7 = vector.broadcast %6 : vector<1x128xf32> to vector<8x128xf32>
    %8 = arith.addf %5, %7 : vector<8x128xf32>
    %cst_6 = arith.constant 5.000000e-01 : f32
    %9 = vector.broadcast %cst_6 : f32 to vector<8x128xf32>
    %10 = arith.mulf %9, %8 : vector<8x128xf32>
    %cst_7 = arith.constant 4.471500e-02 : f32
    %11 = vector.broadcast %cst_7 : f32 to vector<8x128xf32>
    %12 = arith.mulf %11, %8 : vector<8x128xf32>
    %13 = arith.mulf %12, %8 : vector<8x128xf32>
    %14 = arith.mulf %13, %8 : vector<8x128xf32>
    %15 = arith.addf %8, %14 : vector<8x128xf32>
    %cst_8 = arith.constant 0.797884583 : f32
    %16 = vector.broadcast %cst_8 : f32 to vector<8x128xf32>
    %17 = arith.mulf %16, %15 : vector<8x128xf32>
    %18 = math.tanh %17 : vector<8x128xf32>
    %cst_9 = arith.constant 1.000000e+00 : f32
    %19 = vector.broadcast %cst_9 : f32 to vector<8x128xf32>
    %20 = arith.addf %19, %18 : vector<8x128xf32>
    %21 = arith.mulf %10, %20 : vector<8x128xf32>
    %c0_10 = arith.constant 0 : index
    %c0_11 = arith.constant 0 : index
    %22 = vector.load %arg8[%c0_10, %c0_11] : memref<8x128xf32, #tpu.memory_space<vmem>>, vector<8x128xf32>
    %23 = arith.truncf %21 : vector<8x128xf32> to vector<8x128xbf16>
    %c0_12 = arith.constant 0 : index
    %c0_13 = arith.constant 0 : index
    %24 = vector.load %arg5[%c0_12, %c0_13] : memref<128x128xbf16, #tpu.memory_space<vmem>>, vector<128x128xbf16>
    %cst_14 = arith.constant dense<0.000000e+00> : vector<8x128xf32>
    %25 = tpu.matmul %23, %24, %cst_14 {dimension_numbers = #tpu.dot_dimension_numbers<[1], [0], [0], [1], [0, 0, 1, 1], [], []>} : vector<8x128xbf16>, vector<128x128xbf16>, vector<8x128xf32> -> vector<8x128xf32>
    %26 = arith.addf %22, %25 : vector<8x128xf32>
    %c0_15 = arith.constant 0 : index
    %c0_16 = arith.constant 0 : index
    %27 = vector.load %arg8[%c0_15, %c0_16] : memref<8x128xf32, #tpu.memory_space<vmem>>, vector<8x128xf32>
    tpu.vector_store %arg8[%c0_15, %c0_16], %26 {strides = array<i32>} : memref<8x128xf32, #tpu.memory_space<vmem>>, vector<8x128xf32>,
    %c0_i32_17 = arith.constant 0 : i32
    %28 = arith.cmpi eq, %arg1, %c0_i32_17 : i32
    %29 = arith.extui %28 : i1 to i32
    %c0_i32_18 = arith.constant 0 : i32
    %30 = arith.cmpi ne, %29, %c0_i32_18 : i32
    scf.if %30 {
      %c0_19 = arith.constant 0 : index
      %c0_20 = arith.constant 0 : index
      %31 = vector.load %arg8[%c0_19, %c0_20] : memref<8x128xf32, #tpu.memory_space<vmem>>, vector<8x128xf32>
      %c0_21 = arith.constant 0 : index
      %c0_22 = arith.constant 0 : index
      %32 = vector.load %arg7[%c0_21, %c0_22] : memref<8x128xf32, #tpu.memory_space<vmem>>, vector<8x128xf32>
      tpu.vector_store %arg7[%c0_21, %c0_22], %31 {strides = array<i32>} : memref<8x128xf32, #tpu.memory_space<vmem>>, vector<8x128xf32>,
    } else {
    }
    return
  }
  func.func @transform_0(%arg0: i32, %arg1: i32) -> (i32, i32) {
    %c0_i32 = arith.constant 0 : i32
    %c0_i32_0 = arith.constant 0 : i32
    return %arg0, %c0_i32 : i32, i32
  }
  func.func @transform_1(%arg0: i32, %arg1: i32) -> (i32, i32) {
    %c0_i32 = arith.constant 0 : i32
    %c0_i32_0 = arith.constant 0 : i32
    return %c0_i32, %arg1 : i32, i32
  }
  func.func @transform_2(%arg0: i32, %arg1: i32) -> (i32, i32) {
    %c0_i32 = arith.constant 0 : i32
    %c0_i32_0 = arith.constant 0 : i32
    return %c0_i32, %arg1 : i32, i32
  }
  func.func @transform_3(%arg0: i32, %arg1: i32) -> (i32, i32) {
    %c0_i32 = arith.constant 0 : i32
    %c0_i32_0 = arith.constant 0 : i32
    return %arg1, %c0_i32 : i32, i32
  }
  func.func @transform_4(%arg0: i32, %arg1: i32) -> (i32, i32) {
    %c0_i32 = arith.constant 0 : i32
    %c0_i32_0 = arith.constant 0 : i32
    %c0_i32_1 = arith.constant 0 : i32
    return %c0_i32, %c0_i32_0 : i32, i32
  }
  func.func @transform_5(%arg0: i32, %arg1: i32) -> (i32, i32) {
    %c0_i32 = arith.constant 0 : i32
    %c0_i32_0 = arith.constant 0 : i32
    return %arg0, %c0_i32 : i32, i32
  }
}

</mosaic_0001>

<llo_original>
// kernel: tpu_custom_call.1
$region0: #{tpu_custom_call.1}
  #allocation0 [shape = 'u32[]', space=smem, size = 0x4, offset = 0x4, fixed_abs, tag = 'smem constant byte address 0x4 - core index']
  #allocation1 [shape = 'u32[144,128]{1,0:T(1,128)}', space=vmem, size = 0x12000, scoped, tag = 'internal scratch']
  #allocation2 [shape = 'f32[8,128]{1,0:T(8,128)}', space=vmem, size = 0x1000, scoped, tag = 'scratch operand']
  %s0 = inlined_call_operand.hbm [shape: bf16[8,128], index: 0, kind: input, shape index: {}]
  %s1 = inlined_call_operand.hbm [shape: bf16[128,128], index: 1, kind: input, shape index: {}]
  %s2 = inlined_call_operand.vmem [shape: f32[1,128], index: 2, kind: input, shape index: {}]
  %s3 = inlined_call_operand.hbm [shape: bf16[128,128], index: 3, kind: input, shape index: {}]
  %s4 = inlined_call_operand.vmem [shape: f32[1,128], index: 4, kind: input, shape index: {}]
  %s5 = inlined_call_operand.hbm [shape: f32[8,128], index: 5, kind: output, shape index: {}]
  %s6 = sld [smem:[#allocation0]]
  $region50: #{tpu_custom_call.1} parent=0
    _
  %s8 = ssub.s32 1, %s6
  %s9 = scalar_select 0, %s8, %s6
  $region1: #{tpu_custom_call.1} parent=0
    #allocation3 [shape = 'u8[2048]{0}', space=vmem, size = 0x800, scoped, tag = 'input window, operand 0, single buffered']
    #allocation4 [shape = 's32[1]{0}', space=sflag, size = 0x4, scoped, tag = 'scoped memory for tpu_custom_call.1']
    #allocation5 [shape = 's32[1]{0}', space=sflag, size = 0x4, scoped, tag = 'scoped memory for tpu_custom_call.1']
    #allocation6 [shape = 'u8[32768]{0}', space=vmem, size = 0x8000, scoped, tag = 'input window, operand 1, single buffered']
    #allocation7 [shape = 's32[1]{0}', space=sflag, size = 0x4, scoped, tag = 'scoped memory for tpu_custom_call.1']
    #allocation8 [shape = 'u8[32768]{0}', space=vmem, size = 0x8000, scoped, tag = 'input window, operand 3, single buffered']
    #allocation9 [shape = 'u8[4096]{0}', space=vmem, size = 0x1000, scoped, tag = 'output window, operand 0, single buffered']
    %10 = vsyncpa [#allocation4], 0
    %11 = vsyncpa [#allocation7], 0
    %12 = vsyncpa [#allocation5], 0
    // Predicated region
    $region2: #{tpu_custom_call.1} parent=1 // pred_check
      _
    $region3: #{tpu_custom_call.1} parent=1 // pred_check_branch
      %14 = sbr.rel (0) target = $region5
    $region4: #{tpu_custom_call.1} parent=1 // pred_region
      %s16 = ssub.s32 64, 64
      %17 = vsyncadd [#allocation4], %s16
      %s19 = sshll.u32 [#allocation3], 4
      %s20 = int_to_ptr.vmem [resolvable:$true] %s19
      %22 = dma.hbm_to_vmem [thread:$0]  %s0, 64, %s20, [#allocation4]
    $region5: #{tpu_custom_call.1} parent=1 // pred_fallthru
      _
    // Predicated region
    $region6: #{tpu_custom_call.1} parent=1 // pred_check
      _
    $region7: #{tpu_custom_call.1} parent=1 // pred_check_branch
      %24 = sbr.rel (0) target = $region9
    $region8: #{tpu_custom_call.1} parent=1 // pred_region
      %s26 = ssub.s32 1024, 1024
      %27 = vsyncadd [#allocation7], %s26
      %s28 = sshll.u32 [#allocation6], 4
      %s29 = int_to_ptr.vmem [resolvable:$true] %s28
      %34 = dma.hbm_to_vmem [thread:$0]  %s1, 1024, %s29, [#allocation7], 64, 64, 4
    $region9: #{tpu_custom_call.1} parent=1 // pred_fallthru
      _
    // Predicated region
    $region10: #{tpu_custom_call.1} parent=1 // pred_check
      _
    $region11: #{tpu_custom_call.1} parent=1 // pred_check_branch
      %36 = sbr.rel (0) target = $region13
    $region12: #{tpu_custom_call.1} parent=1 // pred_region
      _
    $region13: #{tpu_custom_call.1} parent=1 // pred_fallthru
      _
    // Predicated region
    $region14: #{tpu_custom_call.1} parent=1 // pred_check
      _
    $region15: #{tpu_custom_call.1} parent=1 // pred_check_branch
      %38 = sbr.rel (0) target = $region17
    $region16: #{tpu_custom_call.1} parent=1 // pred_region
      %s40 = ssub.s32 1024, 1024
      %41 = vsyncadd [#allocation7], %s40
      %s42 = sshll.u32 [#allocation8], 4
      %s43 = int_to_ptr.vmem [resolvable:$true] %s42
      %48 = dma.hbm_to_vmem [thread:$0]  %s3, 1024, %s43, [#allocation7], 64, 64, 4
    $region17: #{tpu_custom_call.1} parent=1 // pred_fallthru
      _
    // Predicated region
    $region18: #{tpu_custom_call.1} parent=1 // pred_check
      _
    $region19: #{tpu_custom_call.1} parent=1 // pred_check_branch
      %50 = sbr.rel (0) target = $region21
    $region20: #{tpu_custom_call.1} parent=1 // pred_region
      _
    $region21: #{tpu_custom_call.1} parent=1 // pred_fallthru
      _
    // Predicated region
    $region22: #{tpu_custom_call.1} parent=1 // pred_check
      _
    $region23: #{tpu_custom_call.1} parent=1 // pred_check_branch
      %52 = sbr.rel (0) target = $region25
    $region24: #{tpu_custom_call.1} parent=1 // pred_region
      %53 = dma.done [#allocation4], 64
    $region25: #{tpu_custom_call.1} parent=1 // pred_fallthru
      _
    // Predicated region
    $region26: #{tpu_custom_call.1} parent=1 // pred_check
      _
    $region27: #{tpu_custom_call.1} parent=1 // pred_check_branch
      %55 = sbr.rel (0) target = $region29
    $region28: #{tpu_custom_call.1} parent=1 // pred_region
      %56 = dma.done [#allocation7], 1024
    $region29: #{tpu_custom_call.1} parent=1 // pred_fallthru
      _
    // Predicated region
    $region30: #{tpu_custom_call.1} parent=1 // pred_check
      _
    $region31: #{tpu_custom_call.1} parent=1 // pred_check_branch
      %58 = sbr.rel (0) target = $region33
    $region32: #{tpu_custom_call.1} parent=1 // pred_region
      %59 = dma.done [#allocation7], 1024
    $region33: #{tpu_custom_call.1} parent=1 // pred_fallthru
      _
    %p61 = scmp.eq.s32.totalorder 0, 0
    // Predicated region
    $region34: #{tpu_custom_call.1} parent=1 // pred_check
      %p62 = pneg %p61
    $region35: #{tpu_custom_call.1} parent=1 // pred_check_branch
      %64 = sbr.rel (%p62) target = $region37
    $region36: #{tpu_custom_call.1} parent=1 // pred_region
      %v65 = vld [vmem:[%s4] sm:$0x1]
      %v67 = vlaneseq
      %v68 = vshrl.u32 %v67, 7
      %v69 = vsub.s32 0, %v68
      %v70 = vrot.slane %v65, %v69
      %72 = vst [vmem:[#allocation2] sm:$0xff] %v70
    $region37: #{tpu_custom_call.1} parent=1 // pred_fallthru
      _
    %v73 = vld [vmem:[#allocation3] sm:$0xf]
    %v74 = vld [vmem:[#allocation6] sm:$0xf]
    %v75 = vld [vmem:[#allocation6 + $0x4] sm:$0xf]
    %v76 = vld [vmem:[#allocation6 + $0x8] sm:$0xf]
    %v77 = vld [vmem:[#allocation6 + $0xc] sm:$0xf]
    %v78 = vld [vmem:[#allocation6 + $0x10] sm:$0xf]
    %v79 = vld [vmem:[#allocation6 + $0x14] sm:$0xf]
    %v80 = vld [vmem:[#allocation6 + $0x18] sm:$0xf]
    %v81 = vld [vmem:[#allocation6 + $0x1c] sm:$0xf]
    %v82 = vld [vmem:[#allocation6 + $0x20] sm:$0xf]
    %v83 = vld [vmem:[#allocation6 + $0x24] sm:$0xf]
    %v84 = vld [vmem:[#allocation6 + $0x28] sm:$0xf]
    %v85 = vld [vmem:[#allocation6 + $0x2c] sm:$0xf]
    %v86 = vld [vmem:[#allocation6 + $0x30] sm:$0xf]
    %v87 = vld [vmem:[#allocation6 + $0x34] sm:$0xf]
    %v88 = vld [vmem:[#allocation6 + $0x38] sm:$0xf]
    %v89 = vld [vmem:[#allocation6 + $0x3c] sm:$0xf]
    %v90 = vld [vmem:[%s2] sm:$0x1]
    %v92 = vlaneseq
    %v93 = vshrl.u32 %v92, 7
    %v94 = vsub.s32 0, %v93
    %v95 = vrot.slane %v90, %v94
    %v113 = vunpack.c.l.b16 %v74
    %v114 = vunpack.c.l.b16 %v75
    %v115 = vunpack.c.l.b16 %v76
    %v116 = vunpack.c.l.b16 %v77
    %v117 = vunpack.c.l.b16 %v78
    %v118 = vunpack.c.l.b16 %v79
    %v119 = vunpack.c.l.b16 %v80
    %v120 = vunpack.c.l.b16 %v81
    %v121 = vunpack.c.l.b16 %v82
    %v122 = vunpack.c.l.b16 %v83
    %v123 = vunpack.c.l.b16 %v84
    %v124 = vunpack.c.l.b16 %v85
    %v125 = vunpack.c.l.b16 %v86
    %v126 = vunpack.c.l.b16 %v87
    %v127 = vunpack.c.l.b16 %v88
    %v128 = vunpack.c.l.b16 %v89
    %v129 = vpack.c.b16 %v114, %v113
    %v130 = vpack.c.b16 %v116, %v115
    %v131 = vpack.c.b16 %v118, %v117
    %v132 = vpack.c.b16 %v120, %v119
    %v133 = vpack.c.b16 %v122, %v121
    %v134 = vpack.c.b16 %v124, %v123
    %v135 = vpack.c.b16 %v126, %v125
    %v136 = vpack.c.b16 %v128, %v127
    %145 = vmatprep.subr.bf16.mxu0 0
    %146 = vmatpush1.bf16.msra.mxu0 %v129
    %147 = vmatprep.subr.bf16.mxu0 0
    %148 = vmatpush1.bf16.msra.mxu0 %v130
    %149 = vmatprep.subr.bf16.mxu0 0
    %150 = vmatpush1.bf16.msra.mxu0 %v131
    %151 = vmatprep.subr.bf16.mxu0 0
    %152 = vmatpush1.bf16.msra.mxu0 %v132
    %153 = vmatprep.subr.bf16.mxu0 0
    %154 = vmatpush1.bf16.msra.mxu0 %v133
    %155 = vmatprep.subr.bf16.mxu0 0
    %156 = vmatpush1.bf16.msra.mxu0 %v134
    %157 = vmatprep.subr.bf16.mxu0 0
    %158 = vmatpush1.bf16.msra.mxu0 %v135
    %159 = vmatprep.subr.bf16.mxu0 0
    %160 = vmatpush1.bf16.msra.mxu0 %v136
    %161 = vmatprep.subr.bf16.mxu0 0
    %162 = vmatpush1.bf16.msra.mxu0 0
    %163 = vmatprep.subr.bf16.mxu0 0
    %164 = vmatpush1.bf16.msra.mxu0 0
    %165 = vmatprep.subr.bf16.mxu0 0
    %166 = vmatpush1.bf16.msra.mxu0 0
    %167 = vmatprep.subr.bf16.mxu0 0
    %168 = vmatpush1.bf16.msra.mxu0 0
    %169 = vmatprep.subr.bf16.mxu0 0
    %170 = vmatpush1.bf16.msra.mxu0 0
    %171 = vmatprep.subr.bf16.mxu0 0
    %172 = vmatpush1.bf16.msra.mxu0 0
    %173 = vmatprep.subr.bf16.mxu0 0
    %174 = vmatpush1.bf16.msra.mxu0 0
    %175 = vmatprep.subr.bf16.mxu0 0
    %176 = vmatpush1.bf16.msra.mxu0 0
    %177 = vmatprep.mubr.bf16.mxu0 0
    %178 = vmatmul.mubr.bf16.gmra.mrb[0].mxu0 %v73
    %v179 = vpop.f32.mrb[0].mxu0
    %v180 = vadd.f32 %v95, %v179
    %v181 = vpop.f32.mrb[0].mxu0
    %v182 = vpop.f32.mrb[0].mxu0
    %v183 = vpop.f32.mrb[0].mxu0
    %184 = vdwg.mxu0
    %v185 = vmul.f32 %v180, 0.5
    %v186 = vmul.f32 %v180, 0.044715
    %v187 = vmul.f32 %v186, %v180
    %v188 = vmul.f32 %v187, %v180
    %v189 = vadd.f32 %v180, %v188
    %v190 = vmul.f32 %v189, 0.7978846
    %v191 = vtanh.pop %v190
    %v192 = vadd.f32 %v191, 1.0
    %v193 = vmul.f32 %v185, %v192
    %v194 = vld [vmem:[#allocation2] sm:$0xff]
    %v195 = vpack.c.bf16 %v193, %v193
    %v196 = vld [vmem:[#allocation8] sm:$0xf]
    %v197 = vld [vmem:[#allocation8 + $0x4] sm:$0xf]
    %v198 = vld [vmem:[#allocation8 + $0x8] sm:$0xf]
    %v199 = vld [vmem:[#allocation8 + $0xc] sm:$0xf]
    %v200 = vld [vmem:[#allocation8 + $0x10] sm:$0xf]
    %v201 = vld [vmem:[#allocation8 + $0x14] sm:$0xf]
    %v202 = vld [vmem:[#allocation8 + $0x18] sm:$0xf]
    %v203 = vld [vmem:[#allocation8 + $0x1c] sm:$0xf]
    %v204 = vld [vmem:[#allocation8 + $0x20] sm:$0xf]
    %v205 = vld [vmem:[#allocation8 + $0x24] sm:$0xf]
    %v206 = vld [vmem:[#allocation8 + $0x28] sm:$0xf]
    %v207 = vld [vmem:[#allocation8 + $0x2c] sm:$0xf]
    %v208 = vld [vmem:[#allocation8 + $0x30] sm:$0xf]
    %v209 = vld [vmem:[#allocation8 + $0x34] sm:$0xf]
    %v210 = vld [vmem:[#allocation8 + $0x38] sm:$0xf]
    %v211 = vld [vmem:[#allocation8 + $0x3c] sm:$0xf]
    %v228 = vunpack.c.l.b16 %v196
    %v229 = vunpack.c.l.b16 %v197
    %v230 = vunpack.c.l.b16 %v198
    %v231 = vunpack.c.l.b16 %v199
    %v232 = vunpack.c.l.b16 %v200
    %v233 = vunpack.c.l.b16 %v201
    %v234 = vunpack.c.l.b16 %v202
    %v235 = vunpack.c.l.b16 %v203
    %v236 = vunpack.c.l.b16 %v204
    %v237 = vunpack.c.l.b16 %v205
    %v238 = vunpack.c.l.b16 %v206
    %v239 = vunpack.c.l.b16 %v207
    %v240 = vunpack.c.l.b16 %v208
    %v241 = vunpack.c.l.b16 %v209
    %v242 = vunpack.c.l.b16 %v210
    %v243 = vunpack.c.l.b16 %v211
    %v244 = vpack.c.b16 %v229, %v228
    %v245 = vpack.c.b16 %v231, %v230
    %v246 = vpack.c.b16 %v233, %v232
    %v247 = vpack.c.b16 %v235, %v234
    %v248 = vpack.c.b16 %v237, %v236
    %v249 = vpack.c.b16 %v239, %v238
    %v250 = vpack.c.b16 %v241, %v240
    %v251 = vpack.c.b16 %v243, %v242
    %260 = vmatprep.subr.bf16.mxu0 0
    %261 = vmatpush1.bf16.msra.mxu0 %v244
    %262 = vmatprep.subr.bf16.mxu0 0
    %263 = vmatpush1.bf16.msra.mxu0 %v245
    %264 = vmatprep.subr.bf16.mxu0 0
    %265 = vmatpush1.bf16.msra.mxu0 %v246
    %266 = vmatprep.subr.bf16.mxu0 0
    %267 = vmatpush1.bf16.msra.mxu0 %v247
    %268 = vmatprep.subr.bf16.mxu0 0
    %269 = vmatpush1.bf16.msra.mxu0 %v248
    %270 = vmatprep.subr.bf16.mxu0 0
    %271 = vmatpush1.bf16.msra.mxu0 %v249
    %272 = vmatprep.subr.bf16.mxu0 0
    %273 = vmatpush1.bf16.msra.mxu0 %v250
    %274 = vmatprep.subr.bf16.mxu0 0
    %275 = vmatpush1.bf16.msra.mxu0 %v251
    %276 = vmatprep.subr.bf16.mxu0 0
    %277 = vmatpush1.bf16.msra.mxu0 0
    %278 = vmatprep.subr.bf16.mxu0 0
    %279 = vmatpush1.bf16.msra.mxu0 0
    %280 = vmatprep.subr.bf16.mxu0 0
    %281 = vmatpush1.bf16.msra.mxu0 0
    %282 = vmatprep.subr.bf16.mxu0 0
    %283 = vmatpush1.bf16.msra.mxu0 0
    %284 = vmatprep.subr.bf16.mxu0 0
    %285 = vmatpush1.bf16.msra.mxu0 0
    %286 = vmatprep.subr.bf16.mxu0 0
    %287 = vmatpush1.bf16.msra.mxu0 0
    %288 = vmatprep.subr.bf16.mxu0 0
    %289 = vmatpush1.bf16.msra.mxu0 0
    %290 = vmatprep.subr.bf16.mxu0 0
    %291 = vmatpush1.bf16.msra.mxu0 0
    %292 = vmatprep.mubr.bf16.mxu0 0
    %293 = vmatmul.mubr.bf16.gmra.mrb[0].mxu0 %v195
    %v294 = vpop.f32.mrb[0].mxu0
    %v295 = vadd.f32 0.0, %v294
    %v296 = vpop.f32.mrb[0].mxu0
    %v297 = vpop.f32.mrb[0].mxu0
    %v298 = vpop.f32.mrb[0].mxu0
    %299 = vdwg.mxu0
    %v300 = vadd.f32 %v194, %v295
    %301 = vst [vmem:[#allocation2] sm:$0xff] %v300
    // Predicated region
    $region38: #{tpu_custom_call.1} parent=1 // pred_check
      %p302 = pneg %p61
    $region39: #{tpu_custom_call.1} parent=1 // pred_check_branch
      %304 = sbr.rel (%p302) target = $region41
    $region40: #{tpu_custom_call.1} parent=1 // pred_region
      %v305 = vld [vmem:[#allocation2] sm:$0xff]
      %306 = vst [vmem:[#allocation9] sm:$0xff] %v305
    $region41: #{tpu_custom_call.1} parent=1 // pred_fallthru
      _
    // Predicated region
    $region42: #{tpu_custom_call.1} parent=1 // pred_check
      _
    $region43: #{tpu_custom_call.1} parent=1 // pred_check_branch
      %308 = sbr.rel (0) target = $region45
    $region44: #{tpu_custom_call.1} parent=1 // pred_region
      %s310 = ssub.s32 128, 128
      %311 = vsyncadd [#allocation5], %s310
      %s313 = sshll.u32 [#allocation9], 4
      %s314 = int_to_ptr.vmem [resolvable:$true] %s313
      %316 = dma.vmem_to_hbm [thread:$0]  %s314, 128, %s5, [#allocation5]
    $region45: #{tpu_custom_call.1} parent=1 // pred_fallthru
      _
    // Predicated region
    $region46: #{tpu_custom_call.1} parent=1 // pred_check
      _
    $region47: #{tpu_custom_call.1} parent=1 // pred_check_branch
      %318 = sbr.rel (0) target = $region49
    $region48: #{tpu_custom_call.1} parent=1 // pred_region
      %319 = dma.done [#allocation5], 128
    $region49: #{tpu_custom_call.1} parent=1 // pred_fallthru
      _
    %320 = vsyncpa [#allocation4], 1
    %321 = vsyncpa [#allocation7], 1
    %322 = vsyncpa [#allocation5], 1

</llo_original>
